<compile_context>
chip_gen: v6e
topology: v6e:2x2x1
jax: 0.10.0
libtpu: 0.0.40
codegen_flags: <defaults>
</compile_context>

<pallas_src>
import functools

import jax
import jax.numpy as jnp
from jax.experimental import pallas as pl
from jax.experimental.pallas import tpu as pltpu


def _prop_kernel(coef_ref, a_ref, ys_ref, yi_ref, xi_ref, di_ref, o_ref):
    """One (row-tile i, reduction-tile k) grid step.

    coef_ref : SMEM (3,)   -> [c0, c1, alp] = [1-alp*lam-alp, alp*lam, alp]
    a_ref    : (tm, tk)    adjacency tile (row = dst, col = src)
    ys_ref   : (tk, F)     D^{-1/2} Y, source rows (reduction stream)
    yi_ref   : (tm, F)     Y, destination rows
    xi_ref   : (tm, F)     X, destination rows
    di_ref   : (tm, 1)     deg^{-1/2}, destination rows
    o_ref    : (tm, F)     output block, doubles as the f32 accumulator
    """
    # NOTE: program_id / num_programs are evaluated here at the top level only;
    # nothing grid-index dependent is computed inside the pl.when bodies.
    k = pl.program_id(1)
    is_first = k == 0
    is_last = k == pl.num_programs(1) - 1

    @pl.when(is_first)
    def _():
        o_ref[...] = jnp.zeros_like(o_ref)

    # Accumulate A_tile @ (D^{-1/2} Y)_tile on the MXU with f32 accumulation.
    a = a_ref[...].astype(jnp.float32)
    o_ref[...] += jnp.dot(a, ys_ref[...].astype(jnp.float32),
                          preferred_element_type=jnp.float32)

    @pl.when(is_last)
    def _():
        c0 = coef_ref[0]
        c1 = coef_ref[1]
        alp = coef_ref[2]
        out = (c0 * yi_ref[...].astype(jnp.float32)
               + (c1 * di_ref[...]) * o_ref[...]
               + alp * xi_ref[...].astype(jnp.float32))
        o_ref[...] = out.astype(o_ref.dtype)


def _pick_tile(n, want, quantum):
    """Largest divisor of n that is <= want and a multiple of `quantum`.

    Falls back to the full dimension n (always a legal block size)."""
    want = max(1, min(want, n))
    start = (want // quantum) * quantum
    for d in range(start, 0, -quantum):
        if n % d == 0:
            return d
    return n


def propagate_no_precond(adj, deg, Y, X, alp, lam, *, tm=512, tk=512):
    """Pallas implementation of PropagateNoPrecond.forward.

    adj : [N, N] dense edge-weight matrix (adj[dst, src] = w). Passing it as
          bfloat16 (exact for 0/1 weights) halves the dominant HBM stream.
    deg : [N]    node degrees.
    Y, X: [N, F] node features (feature under propagation / original feature).
    alp, lam : step size / smoothing coefficient (python floats or jnp scalars).
    """
    N, F = Y.shape
    assert adj.shape == (N, N)

    # Tile sizes: tm only needs sublane (8) alignment, tk is the lane dim of the
    # A tile so it needs 128 alignment (or full-N fallback).
    tm = _pick_tile(N, tm, 8)
    tk = _pick_tile(N, tk, 128)
    assert N % tm == 0 and N % tk == 0

    dinv = jnp.power(deg.astype(jnp.float32), -0.5).reshape(N, 1)
    y_scaled = Y.astype(jnp.float32) * dinv                    # D^{-1/2} Y, done once

    # [c0, c1, alp] in SMEM -> no recompile when alp/lam change across calls.
    coeffs = jnp.stack([
        jnp.asarray(1.0 - alp * lam - alp, dtype=jnp.float32),
        jnp.asarray(alp * lam, dtype=jnp.float32),
        jnp.asarray(alp, dtype=jnp.float32),
    ])

    # VMEM budget estimate (double-buffered pipelined inputs + resident blocks).
    a_bytes = jnp.dtype(adj.dtype).itemsize
    est = (2 * tm * tk * a_bytes          # A tiles
           + 2 * tk * F * 4               # Y-source tiles
           + 2 * 3 * tm * F * 4           # Yi / Xi / out blocks
           + 2 * tm * 4                   # dinv tiles
           + (1 << 20))                   # slack
    vmem_limit = int(min(96 * 1024 * 1024, max(32 * 1024 * 1024, 2 * est)))

    grid = (N // tm, N // tk)
    out = pl.pallas_call(
        _prop_kernel,
        out_shape=jax.ShapeDtypeStruct((N, F), jnp.float32),
        grid_spec=pltpu.PrefetchScalarGridSpec(
            num_scalar_prefetch=1,
            grid=grid,
            in_specs=[
                pl.BlockSpec((tm, tk), lambda i, k, c: (i, k)),   # A tile
                pl.BlockSpec((tk, F), lambda i, k, c: (k, 0)),    # D^{-1/2} Y (source)
                pl.BlockSpec((tm, F), lambda i, k, c: (i, 0)),    # Y (dest rows)
                pl.BlockSpec((tm, F), lambda i, k, c: (i, 0)),    # X (dest rows)
                pl.BlockSpec((tm, 1), lambda i, k, c: (i, 0)),    # deg^{-1/2} (dest rows)
            ],
            out_specs=pl.BlockSpec((tm, F), lambda i, k, c: (i, 0)),
        ),
        compiler_params=pltpu.CompilerParams(
            dimension_semantics=("parallel", "arbitrary"),
            vmem_limit_bytes=vmem_limit),
    )(coeffs, adj, y_scaled, Y, X, dinv)
    return out


def _reference(adj, deg, Y, X, alp, lam):
    dinv = jnp.power(deg.astype(jnp.float32), -0.5).reshape(-1, 1)
    nax = dinv * (adj.astype(jnp.float32) @ (dinv * Y.astype(jnp.float32)))
    return (1.0 - alp * lam - alp) * Y + alp * lam * nax + alp * X


if __name__ == "__main__":
    key = jax.random.PRNGKey(0)
    N, F = 256, 128
    k_adj, k_y, k_x = jax.random.split(key, 3)

    # Deterministic synthetic graph: sparse-ish symmetric 0/1 adjacency, unit weights.
    probs = jax.random.uniform(k_adj, (N, N))
    adj_f32 = (probs < 0.05).astype(jnp.float32)
    adj_f32 = jnp.maximum(adj_f32, adj_f32.T)          # symmetric, weights w = 1
    deg = jnp.maximum(adj_f32.sum(axis=1), 1.0)        # node degree, clamp away from 0

    # 0/1 weights are exact in bf16 -> halves the A HBM stream with no error.
    adj = adj_f32.astype(jnp.bfloat16)

    Y = jax.random.normal(k_y, (N, F), dtype=jnp.float32)
    X = jax.random.normal(k_x, (N, F), dtype=jnp.float32)
    alp = 0.1
    lam = 1.0

    # Small tiles here so the multi-tile accumulation path (grid = (2, 2)) is exercised.
    out = propagate_no_precond(adj, deg, Y, X, alp, lam, tm=128, tk=128)
    out = jax.block_until_ready(out)

    ref = _reference(adj_f32, deg, Y, X, alp, lam)
    assert out.shape == (N, F)
    assert jnp.allclose(out, ref, atol=1e-4, rtol=1e-4), float(jnp.max(jnp.abs(out - ref)))
    print("KERNEL_OK")
</pallas_src>

<mosaic_0001>
module attributes {stable_mosaic.version = 11 : i64} {
  func.func @_prop_kernel(%arg0: i32, %arg1: i32, %arg2: memref<3xf32, #tpu.memory_space<smem>>, %arg3: memref<128x128xbf16, #tpu.memory_space<vmem>>, %arg4: memref<128x128xf32, #tpu.memory_space<vmem>>, %arg5: memref<128x128xf32, #tpu.memory_space<vmem>>, %arg6: memref<128x128xf32, #tpu.memory_space<vmem>>, %arg7: memref<128x1xf32, #tpu.memory_space<vmem>>, %arg8: memref<128x128xf32, #tpu.memory_space<vmem>>) attributes {dimension_semantics = [#tpu.dimension_semantics<parallel>, #tpu.dimension_semantics<arbitrary>], iteration_bounds = array<i64: 2, 2>, scalar_prefetch = 1 : i64, scratch_operands = 0 : i64, tpu.core_type = #tpu.core_type<tc>, window_params = [{transform_indices = @transform_0, window_bounds = array<i64: 128, 128>}, {transform_indices = @transform_1, window_bounds = array<i64: 128, 128>}, {transform_indices = @transform_2, window_bounds = array<i64: 128, 128>}, {transform_indices = @transform_3, window_bounds = array<i64: 128, 128>}, {transform_indices = @transform_4, window_bounds = array<i64: 128, 1>}, {transform_indices = @transform_5, window_bounds = array<i64: 128, 128>}]} {
    %c0_i32 = arith.constant 0 : i32
    %0 = arith.cmpi eq, %arg1, %c0_i32 : i32
    %c1_i32 = arith.constant 1 : i32
    %1 = arith.cmpi eq, %arg1, %c1_i32 : i32
    %2 = arith.extui %0 : i1 to i32
    %c0_i32_0 = arith.constant 0 : i32
    %3 = arith.cmpi ne, %2, %c0_i32_0 : i32
    scf.if %3 {
      %cst_9 = arith.constant 0.000000e+00 : f32
      %13 = vector.broadcast %cst_9 : f32 to vector<128x128xf32>
      %c0_10 = arith.constant 0 : index
      %c0_11 = arith.constant 0 : index
      %14 = vector.load %arg8[%c0_10, %c0_11] : memref<128x128xf32, #tpu.memory_space<vmem>>, vector<128x128xf32>
      tpu.vector_store %arg8[%c0_10, %c0_11], %13 {strides = array<i32>} : memref<128x128xf32, #tpu.memory_space<vmem>>, vector<128x128xf32>,
    } else {
    }
    %c0 = arith.constant 0 : index
    %c0_1 = arith.constant 0 : index
    %4 = vector.load %arg3[%c0, %c0_1] : memref<128x128xbf16, #tpu.memory_space<vmem>>, vector<128x128xbf16>
    %5 = arith.extf %4 : vector<128x128xbf16> to vector<128x128xf32>
    %c0_2 = arith.constant 0 : index
    %c0_3 = arith.constant 0 : index
    %6 = vector.load %arg8[%c0_2, %c0_3] : memref<128x128xf32, #tpu.memory_space<vmem>>, vector<128x128xf32>
    %c0_4 = arith.constant 0 : index
    %c0_5 = arith.constant 0 : index
    %7 = vector.load %arg4[%c0_4, %c0_5] : memref<128x128xf32, #tpu.memory_space<vmem>>, vector<128x128xf32>
    %cst = arith.constant dense<0.000000e+00> : vector<128x128xf32>
    %8 = tpu.matmul %5, %7, %cst {dimension_numbers = #tpu.dot_dimension_numbers<[1], [0], [0], [1], [0, 0, 1, 1], [], []>} : vector<128x128xf32>, vector<128x128xf32>, vector<128x128xf32> -> vector<128x128xf32>
    %9 = arith.addf %6, %8 : vector<128x128xf32>
    %c0_6 = arith.constant 0 : index
    %c0_7 = arith.constant 0 : index
    %10 = vector.load %arg8[%c0_6, %c0_7] : memref<128x128xf32, #tpu.memory_space<vmem>>, vector<128x128xf32>
    tpu.vector_store %arg8[%c0_6, %c0_7], %9 {strides = array<i32>} : memref<128x128xf32, #tpu.memory_space<vmem>>, vector<128x128xf32>,
    %11 = arith.extui %1 : i1 to i32
    %c0_i32_8 = arith.constant 0 : i32
    %12 = arith.cmpi ne, %11, %c0_i32_8 : i32
    scf.if %12 {
      %c0_9 = arith.constant 0 : index
      %13 = memref.load %arg2[%c0_9] : memref<3xf32, #tpu.memory_space<smem>>
      %c1 = arith.constant 1 : index
      %14 = memref.load %arg2[%c1] : memref<3xf32, #tpu.memory_space<smem>>
      %c2 = arith.constant 2 : index
      %15 = memref.load %arg2[%c2] : memref<3xf32, #tpu.memory_space<smem>>
      %c0_10 = arith.constant 0 : index
      %c0_11 = arith.constant 0 : index
      %16 = vector.load %arg5[%c0_10, %c0_11] : memref<128x128xf32, #tpu.memory_space<vmem>>, vector<128x128xf32>
      %17 = vector.broadcast %13 : f32 to vector<128x128xf32>
      %18 = arith.mulf %17, %16 : vector<128x128xf32>
      %c0_12 = arith.constant 0 : index
      %c0_13 = arith.constant 0 : index
      %19 = vector.load %arg7[%c0_12, %c0_13] : memref<128x1xf32, #tpu.memory_space<vmem>>, vector<128x1xf32>
      %20 = vector.broadcast %14 : f32 to vector<128x1xf32>
      %21 = arith.mulf %20, %19 : vector<128x1xf32>
      %c0_14 = arith.constant 0 : index
      %c0_15 = arith.constant 0 : index
      %22 = vector.load %arg8[%c0_14, %c0_15] : memref<128x128xf32, #tpu.memory_space<vmem>>, vector<128x128xf32>
      %23 = vector.broadcast %21 : vector<128x1xf32> to vector<128x128xf32>
      %24 = arith.mulf %23, %22 : vector<128x128xf32>
      %25 = arith.addf %18, %24 : vector<128x128xf32>
      %c0_16 = arith.constant 0 : index
      %c0_17 = arith.constant 0 : index
      %26 = vector.load %arg6[%c0_16, %c0_17] : memref<128x128xf32, #tpu.memory_space<vmem>>, vector<128x128xf32>
      %27 = vector.broadcast %15 : f32 to vector<128x128xf32>
      %28 = arith.mulf %27, %26 : vector<128x128xf32>
      %29 = arith.addf %25, %28 : vector<128x128xf32>
      %c0_18 = arith.constant 0 : index
      %c0_19 = arith.constant 0 : index
      %30 = vector.load %arg8[%c0_18, %c0_19] : memref<128x128xf32, #tpu.memory_space<vmem>>, vector<128x128xf32>
      tpu.vector_store %arg8[%c0_18, %c0_19], %29 {strides = array<i32>} : memref<128x128xf32, #tpu.memory_space<vmem>>, vector<128x128xf32>,
    } else {
    }
    return
  }
  func.func @transform_0(%arg0: i32, %arg1: i32, %arg2: memref<3xf32, #tpu.memory_space<smem>>) -> (i32, i32) {
    %c0_i32 = arith.constant 0 : i32
    return %arg0, %arg1 : i32, i32
  }
  func.func @transform_1(%arg0: i32, %arg1: i32, %arg2: memref<3xf32, #tpu.memory_space<smem>>) -> (i32, i32) {
    %c0_i32 = arith.constant 0 : i32
    %c0_i32_0 = arith.constant 0 : i32
    return %arg1, %c0_i32 : i32, i32
  }
  func.func @transform_2(%arg0: i32, %arg1: i32, %arg2: memref<3xf32, #tpu.memory_space<smem>>) -> (i32, i32) {
    %c0_i32 = arith.constant 0 : i32
    %c0_i32_0 = arith.constant 0 : i32
    return %arg0, %c0_i32 : i32, i32
  }
  func.func @transform_3(%arg0: i32, %arg1: i32, %arg2: memref<3xf32, #tpu.memory_space<smem>>) -> (i32, i32) {
    %c0_i32 = arith.constant 0 : i32
    %c0_i32_0 = arith.constant 0 : i32
    return %arg0, %c0_i32 : i32, i32
  }
  func.func @transform_4(%arg0: i32, %arg1: i32, %arg2: memref<3xf32, #tpu.memory_space<smem>>) -> (i32, i32) {
    %c0_i32 = arith.constant 0 : i32
    %c0_i32_0 = arith.constant 0 : i32
    return %arg0, %c0_i32 : i32, i32
  }
  func.func @transform_5(%arg0: i32, %arg1: i32, %arg2: memref<3xf32, #tpu.memory_space<smem>>) -> (i32, i32) {
    %c0_i32 = arith.constant 0 : i32
    %c0_i32_0 = arith.constant 0 : i32
    return %arg0, %c0_i32 : i32, i32
  }
}

</mosaic_0001>

<llo_original>
// kernel: tpu_custom_call.1
$region0: #{tpu_custom_call.1}
  #allocation0 [shape = 'u32[]', space=smem, size = 0x4, offset = 0x4, fixed_abs, tag = 'smem constant byte address 0x4 - core index']
  #allocation1 [shape = 'u32[144,128]{1,0:T(1,128)}', space=vmem, size = 0x12000, scoped, tag = 'internal scratch']
  #allocation2 [shape = 's32[1]{0}', space=sflag, size = 0x4, scoped, tag = 'scoped memory for tpu_custom_call.1']
  #allocation3 [shape = 'u8[512]{0}', space=smem, size = 0x200, scoped, tag = 'prefetched SMEM operand 0']
  %s0 = inlined_call_operand.vmem [shape: f32[3], index: 0, kind: input, shape index: {}]
  %s1 = inlined_call_operand.vmem [shape: bf16[256,256], index: 1, kind: input, shape index: {}]
  %s2 = inlined_call_operand.hbm [shape: f32[256,128], index: 2, kind: input, shape index: {}]
  %s3 = inlined_call_operand.hbm [shape: f32[256,128], index: 3, kind: input, shape index: {}]
  %s4 = inlined_call_operand.hbm [shape: f32[256,128], index: 4, kind: input, shape index: {}]
  %s5 = inlined_call_operand.vmem [shape: f32[256,1], index: 5, kind: input, shape index: {}]
  %s6 = inlined_call_operand.hbm [shape: f32[256,128], index: 6, kind: output, shape index: {}]
  %s7 = sld [smem:[#allocation0]]
  $region114: #{tpu_custom_call.1} parent=0
    _
  %s9 = ssub.s32 1, %s7
  %s10 = scalar_select 0, %s9, %s7
  %s11 = sshll.u32 %s0, 4
  %s12 = int_to_ptr.vmem [resolvable:$true] %s11
  %14 = dma.vmem_to_smem %s12, 16, [#allocation3], [#allocation2]
  %15 = dma.done [#allocation2], 16
  %16 = sfence
  $region1: #{tpu_custom_call.1} parent=0
    #allocation4 [shape = 'u8[65536]{0}', space=vmem, size = 0x10000, scoped, tag = 'input window, operand 1']
    #allocation5 [shape = 'u8[131072]{0}', space=vmem, size = 0x20000, scoped, tag = 'input window, operand 2']
    #allocation6 [shape = 's32[2]{0}', space=sflag, size = 0x8, scoped, tag = 'scoped memory for tpu_custom_call.1']
    #allocation7 [shape = 's32[2]{0}', space=sflag, size = 0x8, scoped, tag = 'scoped memory for tpu_custom_call.1']
    #allocation8 [shape = 'u8[131072]{0}', space=vmem, size = 0x20000, scoped, tag = 'input window, operand 3']
    #allocation9 [shape = 's32[2]{0}', space=sflag, size = 0x8, scoped, tag = 'scoped memory for tpu_custom_call.1']
    #allocation10 [shape = 'u8[131072]{0}', space=vmem, size = 0x20000, scoped, tag = 'input window, operand 4']
    #allocation11 [shape = 'u8[131072]{0}', space=vmem, size = 0x20000, scoped, tag = 'output window, operand 0']
    %17 = vsyncpa [#allocation6], 0
    %s18 = scalar_lea.sflag [#allocation6], 1
    %19 = vsyncpa %s18, 0
    %20 = vsyncpa [#allocation9], 0
    %s21 = scalar_lea.sflag [#allocation9], 1
    %22 = vsyncpa %s21, 0
    %23 = vsyncpa [#allocation7], 0
    %s24 = scalar_lea.sflag [#allocation7], 1
    %25 = vsyncpa %s24, 0
    loop: start=0, step=1, limit=6
    $region2: #{tpu_custom_call.1} parent=1 // loop_pre_header
      _
    $region3: #{tpu_custom_call.1} parent=1 // loop_header
      %s27 = sphi 0, %s31
      %p28 = scmp.ge.s32.totalorder %s27, 6
      %s34 = sphi 0, %s46
      %s35 = sphi 0, %s42
      %s36 = sphi 0, %s34
      %s37 = sphi 0, %s35
      %s38 = sphi 0, %s36
      %s39 = sphi 0, %s37
      %s51 = sphi 0, %s53
      %s54 = sphi 0, %s51
      %s55 = sphi 0, %s54
      %s71 = sphi 0, %s55
      %s77 = sphi 0, %s79
      %s80 = sphi 0, %s77
      %s81 = sphi 0, %s80
      %s97 = sphi 0, %s81
      %s103 = sphi 0, %s105
      %s106 = sphi 0, %s103
      %s107 = sphi 0, %s106
      %s123 = sphi 0, %s107
      %s129 = sphi 0, %s131
      %s132 = sphi 0, %s129
      %s133 = sphi 0, %s132
      %s149 = sphi 0, %s133
      %s155 = sphi 0, %s157
      %s158 = sphi 0, %s155
      %s159 = sphi 0, %s158
      %s175 = sphi 0, %s159
      %s181 = sphi 0, %s183
      %s184 = sphi 0, %s181
      %s185 = sphi 0, %s184
      %s201 = sphi 0, %s185
    $region4: #{tpu_custom_call.1} parent=1 // loop_header_branch
      %30 = sbr.rel (%p28) target = $region8
    $region5: #{tpu_custom_call.1} parent=1 // loop_body
      %s32 = ssub.s32 %s27, 1
      %s33 = ssub.s32 %s27, 2
      %s40 = sadd.s32 1, %s35
      %p41 = scmp.ge.s32.totalorder %s40, 2
      %s42 = scalar_select %p41, 0, %s40
      %s43 = sadd.s32 1, %s34
      %s44 = scalar_select %p41, %s43, %s34
      %p45 = scmp.ge.s32.totalorder %s44, 2
      %s46 = scalar_select %p45, 0, %s44
      %s47 = ssub.s32 %s34, %s46
      %s48 = ssub.s32 %s35, %s42
      %s49 = sor.u32 %s47, %s48
      %p50 = scmp.eq.s32.totalorder %s49, 0
      %s52 = sadd.s32 %s51, 1
      %s53 = scalar_select %p50, %s51, %s52
      %p56 = pneg %p50
      %p57 = scmp.eq.s32.totalorder %s27, 3
      %p58 = por %p56, %p57
      %p59 = scmp.ne.s32.totalorder %s51, %s54
      %p60 = scmp.eq.s32.totalorder %s27, 0
      %p61 = por %p59, %p60
      %p62 = scmp.ne.s32.totalorder %s51, %s54
      %p63 = scmp.eq.s32.totalorder %s32, 3
      %p64 = por %p62, %p63
      %p65 = scmp.ne.s32.totalorder %s54, %s55
      %p66 = scmp.eq.s32.totalorder %s32, 0
      %p67 = por %p65, %p66
      %p68 = scmp.ne.s32.totalorder %s54, %s55
      %p69 = scmp.eq.s32.totalorder %s33, 3
      %p70 = por %p68, %p69
      %p72 = scmp.ne.s32.totalorder %s55, %s71
      %p73 = scmp.eq.s32.totalorder %s33, 0
      %p74 = por %p72, %p73
      %s75 = ssub.s32 %s35, %s42
      %p76 = scmp.eq.s32.totalorder %s75, 0
      %s78 = sadd.s32 %s77, 1
      %s79 = scalar_select %p76, %s77, %s78
      %p82 = pneg %p76
      %p83 = scmp.eq.s32.totalorder %s27, 3
      %p84 = por %p82, %p83
      %p85 = scmp.ne.s32.totalorder %s77, %s80
      %p86 = scmp.eq.s32.totalorder %s27, 0
      %p87 = por %p85, %p86
      %p88 = scmp.ne.s32.totalorder %s77, %s80
      %p89 = scmp.eq.s32.totalorder %s32, 3
      %p90 = por %p88, %p89
      %p91 = scmp.ne.s32.totalorder %s80, %s81
      %p92 = scmp.eq.s32.totalorder %s32, 0
      %p93 = por %p91, %p92
      %p94 = scmp.ne.s32.totalorder %s80, %s81
      %p95 = scmp.eq.s32.totalorder %s33, 3
      %p96 = por %p94, %p95
      %p98 = scmp.ne.s32.totalorder %s81, %s97
      %p99 = scmp.eq.s32.totalorder %s33, 0
      %p100 = por %p98, %p99
      %s101 = ssub.s32 %s34, %s46
      %p102 = scmp.eq.s32.totalorder %s101, 0
      %s104 = sadd.s32 %s103, 1
      %s105 = scalar_select %p102, %s103, %s104
      %p108 = pneg %p102
      %p109 = scmp.eq.s32.totalorder %s27, 3
      %p110 = por %p108, %p109
      %p111 = scmp.ne.s32.totalorder %s103, %s106
      %p112 = scmp.eq.s32.totalorder %s27, 0
      %p113 = por %p111, %p112
      %p114 = scmp.ne.s32.totalorder %s103, %s106
      %p115 = scmp.eq.s32.totalorder %s32, 3
      %p116 = por %p114, %p115
      %p117 = scmp.ne.s32.totalorder %s106, %s107
      %p118 = scmp.eq.s32.totalorder %s32, 0
      %p119 = por %p117, %p118
      %p120 = scmp.ne.s32.totalorder %s106, %s107
      %p121 = scmp.eq.s32.totalorder %s33, 3
      %p122 = por %p120, %p121
      %p124 = scmp.ne.s32.totalorder %s107, %s123
      %p125 = scmp.eq.s32.totalorder %s33, 0
      %p126 = por %p124, %p125
      %s127 = ssub.s32 %s34, %s46
      %p128 = scmp.eq.s32.totalorder %s127, 0
      %s130 = sadd.s32 %s129, 1
      %s131 = scalar_select %p128, %s129, %s130
      %p134 = pneg %p128
      %p135 = scmp.eq.s32.totalorder %s27, 3
      %p136 = por %p134, %p135
      %p137 = scmp.ne.s32.totalorder %s129, %s132
      %p138 = scmp.eq.s32.totalorder %s27, 0
      %p139 = por %p137, %p138
      %p140 = scmp.ne.s32.totalorder %s129, %s132
      %p141 = scmp.eq.s32.totalorder %s32, 3
      %p142 = por %p140, %p141
      %p143 = scmp.ne.s32.totalorder %s132, %s133
      %p144 = scmp.eq.s32.totalorder %s32, 0
      %p145 = por %p143, %p144
      %p146 = scmp.ne.s32.totalorder %s132, %s133
      %p147 = scmp.eq.s32.totalorder %s33, 3
      %p148 = por %p146, %p147
      %p150 = scmp.ne.s32.totalorder %s133, %s149
      %p151 = scmp.eq.s32.totalorder %s33, 0
      %p152 = por %p150, %p151
      %s153 = ssub.s32 %s34, %s46
      %p154 = scmp.eq.s32.totalorder %s153, 0
      %s156 = sadd.s32 %s155, 1
      %s157 = scalar_select %p154, %s155, %s156
      %p160 = pneg %p154
      %p161 = scmp.eq.s32.totalorder %s27, 3
      %p162 = por %p160, %p161
      %p163 = scmp.ne.s32.totalorder %s155, %s158
      %p164 = scmp.eq.s32.totalorder %s27, 0
      %p165 = por %p163, %p164
      %p166 = scmp.ne.s32.totalorder %s155, %s158
      %p167 = scmp.eq.s32.totalorder %s32, 3
      %p168 = por %p166, %p167
      %p169 = scmp.ne.s32.totalorder %s158, %s159
      %p170 = scmp.eq.s32.totalorder %s32, 0
      %p171 = por %p169, %p170
      %p172 = scmp.ne.s32.totalorder %s158, %s159
      %p173 = scmp.eq.s32.totalorder %s33, 3
      %p174 = por %p172, %p173
      %p176 = scmp.ne.s32.totalorder %s159, %s175
      %p177 = scmp.eq.s32.totalorder %s33, 0
      %p178 = por %p176, %p177
      %s179 = ssub.s32 %s34, %s46
      %p180 = scmp.eq.s32.totalorder %s179, 0
      %s182 = sadd.s32 %s181, 1
      %s183 = scalar_select %p180, %s181, %s182
      %p186 = pneg %p180
      %p187 = scmp.eq.s32.totalorder %s27, 3
      %p188 = por %p186, %p187
      %p189 = scmp.ne.s32.totalorder %s181, %s184
      %p190 = scmp.eq.s32.totalorder %s27, 0
      %p191 = por %p189, %p190
      %p192 = scmp.ne.s32.totalorder %s181, %s184
      %p193 = scmp.eq.s32.totalorder %s32, 3
      %p194 = por %p192, %p193
      %p195 = scmp.ne.s32.totalorder %s184, %s185
      %p196 = scmp.eq.s32.totalorder %s32, 0
      %p197 = por %p195, %p196
      %p198 = scmp.ne.s32.totalorder %s184, %s185
      %p199 = scmp.eq.s32.totalorder %s33, 3
      %p200 = por %p198, %p199
      %p202 = scmp.ne.s32.totalorder %s185, %s201
      %p203 = scmp.eq.s32.totalorder %s33, 0
      %p204 = por %p202, %p203
      %p205 = scmp.le.s32.totalorder 1, %s27
      %p206 = scmp.lt.s32.totalorder %s27, 5
      %p207 = pnand %p205, %p206
      %p208 = pneg %p207
      // Predicated region
      $region9: #{tpu_custom_call.1} parent=5 // pred_check
        _
      $region10: #{tpu_custom_call.1} parent=5 // pred_check_branch
        %210 = sbr.rel (%p207) target = $region12
      $region11: #{tpu_custom_call.1} parent=5 // pred_region
        %s211 = ssub.s32 %s27, 1
      $region12: #{tpu_custom_call.1} parent=5 // pred_fallthru
        _
      %p212 = scmp.lt.s32.totalorder %s27, 4
      // Predicated region
      $region13: #{tpu_custom_call.1} parent=5 // pred_check
        %p213 = pneg %p212
      $region14: #{tpu_custom_call.1} parent=5 // pred_check_branch
        %215 = sbr.rel (%p213) target = $region16
      $region15: #{tpu_custom_call.1} parent=5 // pred_region
        // Predicated region
        $region17: #{tpu_custom_call.1} parent=15 // pred_check
          %p216 = pneg %p61
        $region18: #{tpu_custom_call.1} parent=15 // pred_check_branch
          %218 = sbr.rel (%p216) target = $region20
        $region19: #{tpu_custom_call.1} parent=15 // pred_region
          %s219 = sand.u32 %s51, 1
          %s220 = sand.u32 %s51, 1
          %s221 = smul.addr %s220, 64
          %s222 = scalar_lea.vmem [#allocation4], %s221
          %s223 = smul.u32 16, %s34
          %s224 = smul.addr %s223, 2
          %s225 = sadd.s32 %s35, %s224
          %s226 = smul.addr %s225, 4
          %s227 = scalar_lea.vmem %s1, %s226
          // Predicated region
          $region21: #{tpu_custom_call.1} parent=19 // pred_check
            _
          $region22: #{tpu_custom_call.1} parent=19 // pred_check_branch
            %229 = sbr.rel (0) target = $region24
          $region23: #{tpu_custom_call.1} parent=19 // pred_region
            // Predicated region
            $region25: #{tpu_custom_call.1} parent=23 // pred_check
              _
            $region26: #{tpu_custom_call.1} parent=23 // pred_check_branch
              %231 = sbr.rel target = $region28
            $region27: #{tpu_custom_call.1} parent=23 // pred_region
              // Predicated region
              $region40: #{tpu_custom_call.1} parent=27 // pred_check
                _
              $region41: #{tpu_custom_call.1} parent=27 // pred_check_branch
                %277 = sbr.rel (0) target = $region43
              $region42: #{tpu_custom_call.1} parent=27 // pred_region
                loop: start=0, step=1, limit=1
                $region44: #{tpu_custom_call.1} parent=42 // loop_pre_header
                  _
                $region45: #{tpu_custom_call.1} parent=42 // loop_header
                  %s279 = sphi 0, %s283
                  %p280 = scmp.ge.s32.totalorder %s279, 1
                  %s284 = sphi %s227, %s227
                  %s285 = sphi %s222, %s222
                $region46: #{tpu_custom_call.1} parent=42 // loop_header_branch
                  %282 = sbr.rel (%p280) target = $region50
                $region47: #{tpu_custom_call.1} parent=42 // loop_body
                  _
                $region48: #{tpu_custom_call.1} parent=42 // loop_footer
                  %s283 = sadd.s32 1, %s279
                $region49: #{tpu_custom_call.1} parent=42 // loop_footer_branch
                  %278 = sbr.rel target = $region45
                $region50: #{tpu_custom_call.1} parent=42 // loop_exit
                  _
                %s287 = ssub.s32 16, 1
                loop: start=0, step=1, limit=1
                $region51: #{tpu_custom_call.1} parent=42 // loop_pre_header
                  _
                $region52: #{tpu_custom_call.1} parent=42 // loop_header
                  %s289 = sphi 0, %s293
                  %p290 = scmp.ge.s32.totalorder %s289, 1
                  %s294 = sphi %s227, %s227
                  %s295 = sphi %s222, %s222
                $region53: #{tpu_custom_call.1} parent=42 // loop_header_branch
                  %292 = sbr.rel (%p290) target = $region57
                $region54: #{tpu_custom_call.1} parent=42 // loop_body
                  %v296 = vld [vmem:[%s294] sm:%s287]
                  %297 = vst [vmem:[%s295] sm:%s287] %v296
                  %v298 = vld [vmem:[%s294 + $0x8] sm:%s287]
                  %299 = vst [vmem:[%s295 + $0x4] sm:%s287] %v298
                  %v300 = vld [vmem:[%s294 + $0x10] sm:%s287]
                  %301 = vst [vmem:[%s295 + $0x8] sm:%s287] %v300
                  %v302 = vld [vmem:[%s294 + $0x18] sm:%s287]
                  %303 = vst [vmem:[%s295 + $0xc] sm:%s287] %v302
                  %v304 = vld [vmem:[%s294 + $0x20] sm:%s287]
                  %305 = vst [vmem:[%s295 + $0x10] sm:%s287] %v304
                  %v306 = vld [vmem:[%s294 + $0x28] sm:%s287]
                  %307 = vst [vmem:[%s295 + $0x14] sm:%s287] %v306
                  %v308 = vld [vmem:[%s294 + $0x30] sm:%s287]
                  %309 = vst [vmem:[%s295 + $0x18] sm:%s287] %v308
                  %v310 = vld [vmem:[%s294 + $0x38] sm:%s287]
                  %311 = vst [vmem:[%s295 + $0x1c] sm:%s287] %v310
                  %v312 = vld [vmem:[%s294 + $0x40] sm:%s287]
                  %313 = vst [vmem:[%s295 + $0x20] sm:%s287] %v312
                  %v314 = vld [vmem:[%s294 + $0x48] sm:%s287]
                  %315 = vst [vmem:[%s295 + $0x24] sm:%s287] %v314
                  %v316 = vld [vmem:[%s294 + $0x50] sm:%s287]
                  %317 = vst [vmem:[%s295 + $0x28] sm:%s287] %v316
                  %v318 = vld [vmem:[%s294 + $0x58] sm:%s287]
                  %319 = vst [vmem:[%s295 + $0x2c] sm:%s287] %v318
                  %v320 = vld [vmem:[%s294 + $0x60] sm:%s287]
                  %321 = vst [vmem:[%s295 + $0x30] sm:%s287] %v320
                  %v322 = vld [vmem:[%s294 + $0x68] sm:%s287]
                  %323 = vst [vmem:[%s295 + $0x34] sm:%s287] %v322
                  %v324 = vld [vmem:[%s294 + $0x70] sm:%s287]
                  %325 = vst [vmem:[%s295 + $0x38] sm:%s287] %v324
                  %v326 = vld [vmem:[%s294 + $0x78] sm:%s287]
                  %327 = vst [vmem:[%s295 + $0x3c] sm:%s287] %v326
                $region55: #{tpu_custom_call.1} parent=42 // loop_footer
                  %s293 = sadd.s32 1, %s289
                $region56: #{tpu_custom_call.1} parent=42 // loop_footer_branch
                  %288 = sbr.rel target = $region52
                $region57: #{tpu_custom_call.1} parent=42 // loop_exit
                  _
              $region43: #{tpu_custom_call.1} parent=27 // pred_fallthru
                _
            $region28: #{tpu_custom_call.1} parent=23 // pred_fallthru
              _
            // Predicated region
            $region29: #{tpu_custom_call.1} parent=23 // pred_check
              _
            $region30: #{tpu_custom_call.1} parent=23 // pred_check_branch
              %233 = sbr.rel (0) target = $region32
            $region31: #{tpu_custom_call.1} parent=23 // pred_region
              %s235 = ssub.s32 16, 1
              loop: start=0, step=1, limit=1
              $region33: #{tpu_custom_call.1} parent=31 // loop_pre_header
                _
              $region34: #{tpu_custom_call.1} parent=31 // loop_header
                %s237 = sphi 0, %s241
                %p238 = scmp.ge.s32.totalorder %s237, 1
                %s242 = sphi %s227, %s227
                %s243 = sphi %s222, %s222
              $region35: #{tpu_custom_call.1} parent=31 // loop_header_branch
                %240 = sbr.rel (%p238) target = $region39
              $region36: #{tpu_custom_call.1} parent=31 // loop_body
                %v244 = vld [vmem:[%s242] sm:%s235]
                %245 = vst [vmem:[%s243] sm:%s235] %v244
                %v246 = vld [vmem:[%s242 + $0x8] sm:%s235]
                %247 = vst [vmem:[%s243 + $0x4] sm:%s235] %v246
                %v248 = vld [vmem:[%s242 + $0x10] sm:%s235]
                %249 = vst [vmem:[%s243 + $0x8] sm:%s235] %v248
                %v250 = vld [vmem:[%s242 + $0x18] sm:%s235]
                %251 = vst [vmem:[%s243 + $0xc] sm:%s235] %v250
                %v252 = vld [vmem:[%s242 + $0x20] sm:%s235]
                %253 = vst [vmem:[%s243 + $0x10] sm:%s235] %v252
                %v254 = vld [vmem:[%s242 + $0x28] sm:%s235]
                %255 = vst [vmem:[%s243 + $0x14] sm:%s235] %v254
                %v256 = vld [vmem:[%s242 + $0x30] sm:%s235]
                %257 = vst [vmem:[%s243 + $0x18] sm:%s235] %v256
                %v258 = vld [vmem:[%s242 + $0x38] sm:%s235]
                %259 = vst [vmem:[%s243 + $0x1c] sm:%s235] %v258
                %v260 = vld [vmem:[%s242 + $0x40] sm:%s235]
                %261 = vst [vmem:[%s243 + $0x20] sm:%s235] %v260
                %v262 = vld [vmem:[%s242 + $0x48] sm:%s235]
                %263 = vst [vmem:[%s243 + $0x24] sm:%s235] %v262
                %v264 = vld [vmem:[%s242 + $0x50] sm:%s235]
                %265 = vst [vmem:[%s243 + $0x28] sm:%s235] %v264
                %v266 = vld [vmem:[%s242 + $0x58] sm:%s235]
                %267 = vst [vmem:[%s243 + $0x2c] sm:%s235] %v266
                %v268 = vld [vmem:[%s242 + $0x60] sm:%s235]
                %269 = vst [vmem:[%s243 + $0x30] sm:%s235] %v268
                %v270 = vld [vmem:[%s242 + $0x68] sm:%s235]
                %271 = vst [vmem:[%s243 + $0x34] sm:%s235] %v270
                %v272 = vld [vmem:[%s242 + $0x70] sm:%s235]
                %273 = vst [vmem:[%s243 + $0x38] sm:%s235] %v272
                %v274 = vld [vmem:[%s242 + $0x78] sm:%s235]
                %275 = vst [vmem:[%s243 + $0x3c] sm:%s235] %v274
              $region37: #{tpu_custom_call.1} parent=31 // loop_footer
                %s241 = sadd.s32 1, %s237
              $region38: #{tpu_custom_call.1} parent=31 // loop_footer_branch
                %236 = sbr.rel target = $region34
              $region39: #{tpu_custom_call.1} parent=31 // loop_exit
                _
            $region32: #{tpu_custom_call.1} parent=23 // pred_fallthru
              _
          $region24: #{tpu_custom_call.1} parent=19 // pred_fallthru
            _
          %328 = vnop
        $region20: #{tpu_custom_call.1} parent=15 // pred_fallthru
          _
        // Predicated region
        $region58: #{tpu_custom_call.1} parent=15 // pred_check
          %p329 = pneg %p87
        $region59: #{tpu_custom_call.1} parent=15 // pred_check_branch
          %331 = sbr.rel (%p329) target = $region61
        $region60: #{tpu_custom_call.1} parent=15 // pred_region
          %s332 = sand.u32 %s77, 1
          %s333 = scalar_lea.sflag [#allocation6], %s332
          %s334 = sand.u32 %s77, 1
          %s335 = smul.addr %s334, 128
          %s336 = scalar_lea.vmem [#allocation5], %s335
          %s337 = smul.u32 16, %s35
          %s339 = ssub.s32 2048, 2048
          %340 = vsyncadd %s333, %s339
          %s341 = smul.addr %s337, 128
          %s342 = scalar_lea.hbm %s2, %s341
          %s343 = sshll.u32 %s336, 4
          %s344 = int_to_ptr.vmem [resolvable:$true] %s343
          %349 = dma.hbm_to_vmem [thread:$0]  %s342, 2048, %s344, %s333, 128, 128, 8
        $region61: #{tpu_custom_call.1} parent=15 // pred_fallthru
          _
        // Predicated region
        $region62: #{tpu_custom_call.1} parent=15 // pred_check
          %p350 = pneg %p113
        $region63: #{tpu_custom_call.1} parent=15 // pred_check_branch
          %352 = sbr.rel (%p350) target = $region65
        $region64: #{tpu_custom_call.1} parent=15 // pred_region
          %s353 = sand.u32 %s27, 1
          %s354 = scalar_lea.sflag [#allocation9], %s353
          %s355 = sand.u32 %s103, 1
          %s356 = smul.addr %s355, 128
          %s357 = scalar_lea.vmem [#allocation8], %s356
          %s358 = smul.u32 16, %s34
          %s360 = ssub.s32 2048, 2048
          %361 = vsyncadd %s354, %s360
          %s362 = smul.addr %s358, 128
          %s363 = scalar_lea.hbm %s3, %s362
          %s364 = sshll.u32 %s357, 4
          %s365 = int_to_ptr.vmem [resolvable:$true] %s364
          %370 = dma.hbm_to_vmem [thread:$0]  %s363, 2048, %s365, %s354, 128, 128, 8
        $region65: #{tpu_custom_call.1} parent=15 // pred_fallthru
          _
        // Predicated region
        $region66: #{tpu_custom_call.1} parent=15 // pred_check
          %p371 = pneg %p139
        $region67: #{tpu_custom_call.1} parent=15 // pred_check_branch
          %373 = sbr.rel (%p371) target = $region69
        $region68: #{tpu_custom_call.1} parent=15 // pred_region
          %s374 = sand.u32 %s27, 1
          %s375 = scalar_lea.sflag [#allocation9], %s374
          %s376 = sand.u32 %s129, 1
          %s377 = smul.addr %s376, 128
          %s378 = scalar_lea.vmem [#allocation10], %s377
          %s379 = smul.u32 16, %s34
          %s381 = ssub.s32 2048, 2048
          %382 = vsyncadd %s375, %s381
          %s383 = smul.addr %s379, 128
          %s384 = scalar_lea.hbm %s4, %s383
          %s385 = sshll.u32 %s378, 4
          %s386 = int_to_ptr.vmem [resolvable:$true] %s385
          %391 = dma.hbm_to_vmem [thread:$0]  %s384, 2048, %s386, %s375, 128, 128, 8
        $region69: #{tpu_custom_call.1} parent=15 // pred_fallthru
          _
        // Predicated region
        $region70: #{tpu_custom_call.1} parent=15 // pred_check
          %p392 = pneg %p165
        $region71: #{tpu_custom_call.1} parent=15 // pred_check_branch
          %394 = sbr.rel (%p392) target = $region73
        $region72: #{tpu_custom_call.1} parent=15 // pred_region
          %s395 = smul.u32 16, %s34
          %p396 = scmp.lt.s32.totalorder %s395, 31
          %s397 = scalar_select %p396, %s395, 31
          %s398 = smul.addr %s397, 8
          %s399 = scalar_lea.vmem %s5, %s398
          %s400 = smul.u32 16, %s34
        $region73: #{tpu_custom_call.1} parent=15 // pred_fallthru
          _
      $region16: #{tpu_custom_call.1} parent=5 // pred_fallthru
        _
      %p401 = scmp.le.s32.totalorder 1, %s27
      %p402 = scmp.lt.s32.totalorder %s27, 5
      %p403 = pnand %p401, %p402
      %p404 = pneg %p403
      // Predicated region
      $region74: #{tpu_custom_call.1} parent=5 // pred_check
        _
      $region75: #{tpu_custom_call.1} parent=5 // pred_check_branch
        %406 = sbr.rel (%p403) target = $region77
      $region76: #{tpu_custom_call.1} parent=5 // pred_region
        %s407 = ssub.s32 %s27, 1
        %s408 = sand.u32 %s54, 1
        %s409 = sand.u32 %s54, 1
        %s410 = smul.addr %s409, 64
        %s411 = scalar_lea.vmem [#allocation4], %s410
        // Predicated region
        $region78: #{tpu_custom_call.1} parent=76 // pred_check
          %p412 = pneg %p67
        $region79: #{tpu_custom_call.1} parent=76 // pred_check_branch
          %414 = sbr.rel (%p412) target = $region81
        $region80: #{tpu_custom_call.1} parent=76 // pred_region
          _
        $region81: #{tpu_custom_call.1} parent=76 // pred_fallthru
          _
        %s415 = sand.u32 %s80, 1
        %s416 = scalar_lea.sflag [#allocation6], %s415
        %s417 = sand.u32 %s80, 1
        %s418 = smul.addr %s417, 128
        %s419 = scalar_lea.vmem [#allocation5], %s418
        // Predicated region
        $region82: #{tpu_custom_call.1} parent=76 // pred_check
          %p420 = pneg %p93
        $region83: #{tpu_custom_call.1} parent=76 // pred_check_branch
          %422 = sbr.rel (%p420) target = $region85
        $region84: #{tpu_custom_call.1} parent=76 // pred_region
          %423 = dma.done %s416, 2048
        $region85: #{tpu_custom_call.1} parent=76 // pred_fallthru
          _
        %s424 = sand.u32 %s32, 1
        %s425 = scalar_lea.sflag [#allocation9], %s424
        %s426 = sand.u32 %s106, 1
        %s427 = smul.addr %s426, 128
        %s428 = scalar_lea.vmem [#allocation8], %s427
        // Predicated region
        $region86: #{tpu_custom_call.1} parent=76 // pred_check
          %p429 = pneg %p119
        $region87: #{tpu_custom_call.1} parent=76 // pred_check_branch
          %431 = sbr.rel (%p429) target = $region89
        $region88: #{tpu_custom_call.1} parent=76 // pred_region
          %432 = dma.done %s425, 2048
        $region89: #{tpu_custom_call.1} parent=76 // pred_fallthru
          _
        %s433 = sand.u32 %s32, 1
        %s434 = scalar_lea.sflag [#allocation9], %s433
        %s435 = sand.u32 %s132, 1
        %s436 = smul.addr %s435, 128
        %s437 = scalar_lea.vmem [#allocation10], %s436
        // Predicated region
        $region90: #{tpu_custom_call.1} parent=76 // pred_check
          %p438 = pneg %p145
        $region91: #{tpu_custom_call.1} parent=76 // pred_check_branch
          %440 = sbr.rel (%p438) target = $region93
        $region92: #{tpu_custom_call.1} parent=76 // pred_region
          %441 = dma.done %s434, 2048
        $region93: #{tpu_custom_call.1} parent=76 // pred_fallthru
          _
        %s442 = sand.u32 %s54, 1
        %s443 = sand.u32 %s54, 1
        %s444 = smul.addr %s443, 64
        %s445 = scalar_lea.vmem [#allocation4], %s444
        %p446 = pneg %p67
        %p447 = pneg %p64
        %s448 = sand.u32 %s80, 1
        %s449 = scalar_lea.sflag [#allocation6], %s448
        %s450 = sand.u32 %s80, 1
        %s451 = smul.addr %s450, 128
        %s452 = scalar_lea.vmem [#allocation5], %s451
        %p453 = pneg %p93
        %p454 = pneg %p90
        %s455 = sand.u32 %s32, 1
        %s456 = scalar_lea.sflag [#allocation9], %s455
        %s457 = sand.u32 %s106, 1
        %s458 = smul.addr %s457, 128
        %s459 = scalar_lea.vmem [#allocation8], %s458
        %p460 = pneg %p119
        %p461 = pneg %p116
        %s462 = sand.u32 %s32, 1
        %s463 = scalar_lea.sflag [#allocation9], %s462
        %s464 = sand.u32 %s132, 1
        %s465 = smul.addr %s464, 128
        %s466 = scalar_lea.vmem [#allocation10], %s465
        %p467 = pneg %p145
        %p468 = pneg %p142
        %s469 = smul.u32 16, %s36
        %p470 = scmp.lt.s32.totalorder %s469, 31
        %s471 = scalar_select %p470, %s469, 31
        %s472 = smul.addr %s471, 8
        %s473 = scalar_lea.vmem %s5, %s472
        %p474 = pneg %p171
        %p475 = pneg %p168
        %p476 = pneg %p197
        %p477 = pneg %p194
        %s478 = sand.u32 %s184, 1
        %s479 = scalar_lea.sflag [#allocation7], %s478
        %s480 = sand.u32 %s184, 1
        %s481 = smul.addr %s480, 128
        %s482 = scalar_lea.vmem [#allocation11], %s481
        %s483 = smul.u32 16, %s36
        %s484 = smul.u32 16, %s37
        %s485 = smul.u32 16, %s36
        %s486 = smul.u32 16, %s36
        %s487 = smul.u32 16, %s36
        %p488 = scmp.lt.s32.totalorder %s487, 31
        %s489 = scalar_select %p488, %s487, 31
        %s490 = smul.addr %s489, 8
        %s491 = scalar_lea.vmem %s5, %s490
        %s492 = smul.u32 16, %s36
        %s493 = smul.u32 16, %s36
        %p494 = scmp.eq.s32.totalorder %s37, 0
        %p495 = scmp.eq.s32.totalorder %s37, 1
        // Predicated region
        $region94: #{tpu_custom_call.1} parent=76 // pred_check
          %p496 = pneg %p494
        $region95: #{tpu_custom_call.1} parent=76 // pred_check_branch
          %498 = sbr.rel (%p496) target = $region97
        $region96: #{tpu_custom_call.1} parent=76 // pred_region
          %499 = vst [vmem:[%s482] sm:$0xff] 0.0
          %500 = vst [vmem:[%s482 + $0x8] sm:$0xff] 0.0
          %501 = vst [vmem:[%s482 + $0x10] sm:$0xff] 0.0
          %502 = vst [vmem:[%s482 + $0x18] sm:$0xff] 0.0
          %503 = vst [vmem:[%s482 + $0x20] sm:$0xff] 0.0
          %504 = vst [vmem:[%s482 + $0x28] sm:$0xff] 0.0
          %505 = vst [vmem:[%s482 + $0x30] sm:$0xff] 0.0
          %506 = vst [vmem:[%s482 + $0x38] sm:$0xff] 0.0
          %507 = vst [vmem:[%s482 + $0x40] sm:$0xff] 0.0
          %508 = vst [vmem:[%s482 + $0x48] sm:$0xff] 0.0
          %509 = vst [vmem:[%s482 + $0x50] sm:$0xff] 0.0
          %510 = vst [vmem:[%s482 + $0x58] sm:$0xff] 0.0
          %511 = vst [vmem:[%s482 + $0x60] sm:$0xff] 0.0
          %512 = vst [vmem:[%s482 + $0x68] sm:$0xff] 0.0
          %513 = vst [vmem:[%s482 + $0x70] sm:$0xff] 0.0
          %514 = vst [vmem:[%s482 + $0x78] sm:$0xff] 0.0
        $region97: #{tpu_custom_call.1} parent=76 // pred_fallthru
          _
        %v515 = vld [vmem:[%s411] sm:$0xf]
        %v516 = vld [vmem:[%s411 + $0x4] sm:$0xf]
        %v517 = vld [vmem:[%s411 + $0x8] sm:$0xf]
        %v518 = vld [vmem:[%s411 + $0xc] sm:$0xf]
        %v519 = vld [vmem:[%s411 + $0x10] sm:$0xf]
        %v520 = vld [vmem:[%s411 + $0x14] sm:$0xf]
        %v521 = vld [vmem:[%s411 + $0x18] sm:$0xf]
        %v522 = vld [vmem:[%s411 + $0x1c] sm:$0xf]
        %v523 = vld [vmem:[%s411 + $0x20] sm:$0xf]
        %v524 = vld [vmem:[%s411 + $0x24] sm:$0xf]
        %v525 = vld [vmem:[%s411 + $0x28] sm:$0xf]
        %v526 = vld [vmem:[%s411 + $0x2c] sm:$0xf]
        %v527 = vld [vmem:[%s411 + $0x30] sm:$0xf]
        %v528 = vld [vmem:[%s411 + $0x34] sm:$0xf]
        %v529 = vld [vmem:[%s411 + $0x38] sm:$0xf]
        %v530 = vld [vmem:[%s411 + $0x3c] sm:$0xf]
        %v531 = vunpack.c.l.bf16 %v515
        %v532 = vunpack.c.l.bf16 %v516
        %v533 = vunpack.c.l.bf16 %v517
        %v534 = vunpack.c.l.bf16 %v518
        %v535 = vunpack.c.l.bf16 %v519
        %v536 = vunpack.c.l.bf16 %v520
        %v537 = vunpack.c.l.bf16 %v521
        %v538 = vunpack.c.l.bf16 %v522
        %v539 = vunpack.c.l.bf16 %v523
        %v540 = vunpack.c.l.bf16 %v524
        %v541 = vunpack.c.l.bf16 %v525
        %v542 = vunpack.c.l.bf16 %v526
        %v543 = vunpack.c.l.bf16 %v527
        %v544 = vunpack.c.l.bf16 %v528
        %v545 = vunpack.c.l.bf16 %v529
        %v546 = vunpack.c.l.bf16 %v530
        %v547 = vld [vmem:[%s482] sm:$0xff]
        %v548 = vld [vmem:[%s482 + $0x8] sm:$0xff]
        %v549 = vld [vmem:[%s482 + $0x10] sm:$0xff]
        %v550 = vld [vmem:[%s482 + $0x18] sm:$0xff]
        %v551 = vld [vmem:[%s482 + $0x20] sm:$0xff]
        %v552 = vld [vmem:[%s482 + $0x28] sm:$0xff]
        %v553 = vld [vmem:[%s482 + $0x30] sm:$0xff]
        %v554 = vld [vmem:[%s482 + $0x38] sm:$0xff]
        %v555 = vld [vmem:[%s482 + $0x40] sm:$0xff]
        %v556 = vld [vmem:[%s482 + $0x48] sm:$0xff]
        %v557 = vld [vmem:[%s482 + $0x50] sm:$0xff]
        %v558 = vld [vmem:[%s482 + $0x58] sm:$0xff]
        %v559 = vld [vmem:[%s482 + $0x60] sm:$0xff]
        %v560 = vld [vmem:[%s482 + $0x68] sm:$0xff]
        %v561 = vld [vmem:[%s482 + $0x70] sm:$0xff]
        %v562 = vld [vmem:[%s482 + $0x78] sm:$0xff]
        %v563 = vld [vmem:[%s419] sm:$0xff]
        %v564 = vld [vmem:[%s419 + $0x8] sm:$0xff]
        %v565 = vld [vmem:[%s419 + $0x10] sm:$0xff]
        %v566 = vld [vmem:[%s419 + $0x18] sm:$0xff]
        %v567 = vld [vmem:[%s419 + $0x20] sm:$0xff]
        %v568 = vld [vmem:[%s419 + $0x28] sm:$0xff]
        %v569 = vld [vmem:[%s419 + $0x30] sm:$0xff]
        %v570 = vld [vmem:[%s419 + $0x38] sm:$0xff]
        %v571 = vld [vmem:[%s419 + $0x40] sm:$0xff]
        %v572 = vld [vmem:[%s419 + $0x48] sm:$0xff]
        %v573 = vld [vmem:[%s419 + $0x50] sm:$0xff]
        %v574 = vld [vmem:[%s419 + $0x58] sm:$0xff]
        %v575 = vld [vmem:[%s419 + $0x60] sm:$0xff]
        %v576 = vld [vmem:[%s419 + $0x68] sm:$0xff]
        %v577 = vld [vmem:[%s419 + $0x70] sm:$0xff]
        %v578 = vld [vmem:[%s419 + $0x78] sm:$0xff]
        %579 = vmatprep.subr.mxu0 0.0
        %580 = vmatpush1.msra.mxu0 %v578
        %581 = vmatprep.subr.mxu0 0.0
        %582 = vmatpush1.msra.mxu0 %v577
        %583 = vmatprep.subr.mxu0 0.0
        %584 = vmatpush1.msra.mxu0 %v576
        %585 = vmatprep.subr.mxu0 0.0
        %586 = vmatpush1.msra.mxu0 %v575
        %587 = vmatprep.subr.mxu0 0.0
        %588 = vmatpush1.msra.mxu0 %v574
        %589 = vmatprep.subr.mxu0 0.0
        %590 = vmatpush1.msra.mxu0 %v573
        %591 = vmatprep.subr.mxu0 0.0
        %592 = vmatpush1.msra.mxu0 %v572
        %593 = vmatprep.subr.mxu0 0.0
        %594 = vmatpush1.msra.mxu0 %v571
        %595 = vmatprep.subr.mxu0 0.0
        %596 = vmatpush1.msra.mxu0 %v570
        %597 = vmatprep.subr.mxu0 0.0
        %598 = vmatpush1.msra.mxu0 %v569
        %599 = vmatprep.subr.mxu0 0.0
        %600 = vmatpush1.msra.mxu0 %v568
        %601 = vmatprep.subr.mxu0 0.0
        %602 = vmatpush1.msra.mxu0 %v567
        %603 = vmatprep.subr.mxu0 0.0
        %604 = vmatpush1.msra.mxu0 %v566
        %605 = vmatprep.subr.mxu0 0.0
        %606 = vmatpush1.msra.mxu0 %v565
        %607 = vmatprep.subr.mxu0 0.0
        %608 = vmatpush1.msra.mxu0 %v564
        %609 = vmatprep.subr.mxu0 0.0
        %610 = vmatpush1.msra.mxu0 %v563
        %611 = vmatprep.subr.mxu0 0.0
        %612 = vmatpush2.msra.mxu0 0.0
        %613 = vmatprep.subr.mxu0 0.0
        %614 = vmatpush2.msra.mxu0 0.0
        %615 = vmatprep.subr.mxu0 0.0
        %616 = vmatpush2.msra.mxu0 0.0
        %617 = vmatprep.subr.mxu0 0.0
        %618 = vmatpush2.msra.mxu0 0.0
        %619 = vmatprep.subr.mxu0 0.0
        %620 = vmatpush2.msra.mxu0 0.0
        %621 = vmatprep.subr.mxu0 0.0
        %622 = vmatpush2.msra.mxu0 0.0
        %623 = vmatprep.subr.mxu0 0.0
        %624 = vmatpush2.msra.mxu0 0.0
        %625 = vmatprep.subr.mxu0 0.0
        %626 = vmatpush2.msra.mxu0 0.0
        %627 = vmatprep.subr.mxu0 0.0
        %628 = vmatpush2.msra.mxu0 0.0
        %629 = vmatprep.subr.mxu0 0.0
        %630 = vmatpush2.msra.mxu0 0.0
        %631 = vmatprep.subr.mxu0 0.0
        %632 = vmatpush2.msra.mxu0 0.0
        %633 = vmatprep.subr.mxu0 0.0
        %634 = vmatpush2.msra.mxu0 0.0
        %635 = vmatprep.subr.mxu0 0.0
        %636 = vmatpush2.msra.mxu0 0.0
        %637 = vmatprep.subr.mxu0 0.0
        %638 = vmatpush2.msra.mxu0 0.0
        %639 = vmatprep.subr.mxu0 0.0
        %640 = vmatpush2.msra.mxu0 0.0
        %641 = vmatprep.subr.mxu0 0.0
        %642 = vmatpush2.msra.mxu0 0.0
        %643 = vmatprep.mubr.f32.mxu0 0.0
        %644 = vmatmul.mubr.f32.gmra.mxu0 %v531
        %v645 = vpop.f32.mrf.mxu0
        %v646 = vadd.f32 0.0, %v645
        %v647 = vpop.f32.mrf.mxu0
        %648 = vmatprep.mubr.f32.mxu0 0.0
        %649 = vmatmul.mubr.f32.gmra.mxu0 %v532
        %v650 = vpop.f32.mrf.mxu0
        %v651 = vadd.f32 0.0, %v650
        %v652 = vpop.f32.mrf.mxu0
        %653 = vmatprep.mubr.f32.mxu0 0.0
        %654 = vmatmul.mubr.f32.gmra.mxu0 %v533
        %v655 = vpop.f32.mrf.mxu0
        %v656 = vadd.f32 0.0, %v655
        %v657 = vpop.f32.mrf.mxu0
        %658 = vmatprep.mubr.f32.mxu0 0.0
        %659 = vmatmul.mubr.f32.gmra.mxu0 %v534
        %v660 = vpop.f32.mrf.mxu0
        %v661 = vadd.f32 0.0, %v660
        %v662 = vpop.f32.mrf.mxu0
        %663 = vmatprep.mubr.f32.mxu0 0.0
        %664 = vmatmul.mubr.f32.gmra.mxu0 %v535
        %v665 = vpop.f32.mrf.mxu0
        %v666 = vadd.f32 0.0, %v665
        %v667 = vpop.f32.mrf.mxu0
        %668 = vmatprep.mubr.f32.mxu0 0.0
        %669 = vmatmul.mubr.f32.gmra.mxu0 %v536
        %v670 = vpop.f32.mrf.mxu0
        %v671 = vadd.f32 0.0, %v670
        %v672 = vpop.f32.mrf.mxu0
        %673 = vmatprep.mubr.f32.mxu0 0.0
        %674 = vmatmul.mubr.f32.gmra.mxu0 %v537
        %v675 = vpop.f32.mrf.mxu0
        %v676 = vadd.f32 0.0, %v675
        %v677 = vpop.f32.mrf.mxu0
        %678 = vmatprep.mubr.f32.mxu0 0.0
        %679 = vmatmul.mubr.f32.gmra.mxu0 %v538
        %v680 = vpop.f32.mrf.mxu0
        %v681 = vadd.f32 0.0, %v680
        %v682 = vpop.f32.mrf.mxu0
        %683 = vmatprep.mubr.f32.mxu0 0.0
        %684 = vmatmul.mubr.f32.gmra.mxu0 %v539
        %v685 = vpop.f32.mrf.mxu0
        %v686 = vadd.f32 0.0, %v685
        %v687 = vpop.f32.mrf.mxu0
        %688 = vmatprep.mubr.f32.mxu0 0.0
        %689 = vmatmul.mubr.f32.gmra.mxu0 %v540
        %v690 = vpop.f32.mrf.mxu0
        %v691 = vadd.f32 0.0, %v690
        %v692 = vpop.f32.mrf.mxu0
        %693 = vmatprep.mubr.f32.mxu0 0.0
        %694 = vmatmul.mubr.f32.gmra.mxu0 %v541
        %v695 = vpop.f32.mrf.mxu0
        %v696 = vadd.f32 0.0, %v695
        %v697 = vpop.f32.mrf.mxu0
        %698 = vmatprep.mubr.f32.mxu0 0.0
        %699 = vmatmul.mubr.f32.gmra.mxu0 %v542
        %v700 = vpop.f32.mrf.mxu0
        %v701 = vadd.f32 0.0, %v700
        %v702 = vpop.f32.mrf.mxu0
        %703 = vmatprep.mubr.f32.mxu0 0.0
        %704 = vmatmul.mubr.f32.gmra.mxu0 %v543
        %v705 = vpop.f32.mrf.mxu0
        %v706 = vadd.f32 0.0, %v705
        %v707 = vpop.f32.mrf.mxu0
        %708 = vmatprep.mubr.f32.mxu0 0.0
        %709 = vmatmul.mubr.f32.gmra.mxu0 %v544
        %v710 = vpop.f32.mrf.mxu0
        %v711 = vadd.f32 0.0, %v710
        %v712 = vpop.f32.mrf.mxu0
        %713 = vmatprep.mubr.f32.mxu0 0.0
        %714 = vmatmul.mubr.f32.gmra.mxu0 %v545
        %v715 = vpop.f32.mrf.mxu0
        %v716 = vadd.f32 0.0, %v715
        %v717 = vpop.f32.mrf.mxu0
        %718 = vmatprep.mubr.f32.mxu0 0.0
        %719 = vmatmul.mubr.f32.gmra.mxu0 %v546
        %v720 = vpop.f32.mrf.mxu0
        %v721 = vadd.f32 0.0, %v720
        %v722 = vpop.f32.mrf.mxu0
        %723 = vdwg.mxu0
        %v724 = vadd.f32 %v547, %v646
        %v725 = vadd.f32 %v548, %v651
        %v726 = vadd.f32 %v549, %v656
        %v727 = vadd.f32 %v550, %v661
        %v728 = vadd.f32 %v551, %v666
        %v729 = vadd.f32 %v552, %v671
        %v730 = vadd.f32 %v553, %v676
        %v731 = vadd.f32 %v554, %v681
        %v732 = vadd.f32 %v555, %v686
        %v733 = vadd.f32 %v556, %v691
        %v734 = vadd.f32 %v557, %v696
        %v735 = vadd.f32 %v558, %v701
        %v736 = vadd.f32 %v559, %v706
        %v737 = vadd.f32 %v560, %v711
        %v738 = vadd.f32 %v561, %v716
        %v739 = vadd.f32 %v562, %v721
        %740 = vst [vmem:[%s482] sm:$0xff] %v724
        %741 = vst [vmem:[%s482 + $0x8] sm:$0xff] %v725
        %742 = vst [vmem:[%s482 + $0x10] sm:$0xff] %v726
        %743 = vst [vmem:[%s482 + $0x18] sm:$0xff] %v727
        %744 = vst [vmem:[%s482 + $0x20] sm:$0xff] %v728
        %745 = vst [vmem:[%s482 + $0x28] sm:$0xff] %v729
        %746 = vst [vmem:[%s482 + $0x30] sm:$0xff] %v730
        %747 = vst [vmem:[%s482 + $0x38] sm:$0xff] %v731
        %748 = vst [vmem:[%s482 + $0x40] sm:$0xff] %v732
        %749 = vst [vmem:[%s482 + $0x48] sm:$0xff] %v733
        %750 = vst [vmem:[%s482 + $0x50] sm:$0xff] %v734
        %751 = vst [vmem:[%s482 + $0x58] sm:$0xff] %v735
        %752 = vst [vmem:[%s482 + $0x60] sm:$0xff] %v736
        %753 = vst [vmem:[%s482 + $0x68] sm:$0xff] %v737
        %754 = vst [vmem:[%s482 + $0x70] sm:$0xff] %v738
        %755 = vst [vmem:[%s482 + $0x78] sm:$0xff] %v739
        // Predicated region
        $region98: #{tpu_custom_call.1} parent=76 // pred_check
          %p756 = pneg %p495
        $region99: #{tpu_custom_call.1} parent=76 // pred_check_branch
          %758 = sbr.rel (%p756) target = $region101
        $region100: #{tpu_custom_call.1} parent=76 // pred_region
          %s759 = sld [smem:[#allocation3]]
          %s760 = sld [smem:[#allocation3 + $0x1]]
          %s761 = sld [smem:[#allocation3 + $0x2]]
          %v762 = vld [vmem:[%s428] sm:$0xff]
          %v763 = vld [vmem:[%s428 + $0x8] sm:$0xff]
          %v764 = vld [vmem:[%s428 + $0x10] sm:$0xff]
          %v765 = vld [vmem:[%s428 + $0x18] sm:$0xff]
          %v766 = vld [vmem:[%s428 + $0x20] sm:$0xff]
          %v767 = vld [vmem:[%s428 + $0x28] sm:$0xff]
          %v768 = vld [vmem:[%s428 + $0x30] sm:$0xff]
          %v769 = vld [vmem:[%s428 + $0x38] sm:$0xff]
          %v770 = vld [vmem:[%s428 + $0x40] sm:$0xff]
          %v771 = vld [vmem:[%s428 + $0x48] sm:$0xff]
          %v772 = vld [vmem:[%s428 + $0x50] sm:$0xff]
          %v773 = vld [vmem:[%s428 + $0x58] sm:$0xff]
          %v774 = vld [vmem:[%s428 + $0x60] sm:$0xff]
          %v775 = vld [vmem:[%s428 + $0x68] sm:$0xff]
          %v776 = vld [vmem:[%s428 + $0x70] sm:$0xff]
          %v777 = vld [vmem:[%s428 + $0x78] sm:$0xff]
          %v778 = vstv %s759
          %v779 = vmul.f32 %v778, %v762
          %v780 = vmul.f32 %v778, %v763
          %v781 = vmul.f32 %v778, %v764
          %v782 = vmul.f32 %v778, %v765
          %v783 = vmul.f32 %v778, %v766
          %v784 = vmul.f32 %v778, %v767
          %v785 = vmul.f32 %v778, %v768
          %v786 = vmul.f32 %v778, %v769
          %v787 = vmul.f32 %v778, %v770
          %v788 = vmul.f32 %v778, %v771
          %v789 = vmul.f32 %v778, %v772
          %v790 = vmul.f32 %v778, %v773
          %v791 = vmul.f32 %v778, %v774
          %v792 = vmul.f32 %v778, %v775
          %v793 = vmul.f32 %v778, %v776
          %v794 = vmul.f32 %v778, %v777
          %v795 = vld [vmem:[%s491] sm:$0xff]
          %v796 = vld [vmem:[%s491 + $0x8] sm:$0xff]
          %v797 = vld [vmem:[%s491 + $0x10] sm:$0xff]
          %v798 = vld [vmem:[%s491 + $0x18] sm:$0xff]
          %v799 = vld [vmem:[%s491 + $0x20] sm:$0xff]
          %v800 = vld [vmem:[%s491 + $0x28] sm:$0xff]
          %v801 = vld [vmem:[%s491 + $0x30] sm:$0xff]
          %v802 = vld [vmem:[%s491 + $0x38] sm:$0xff]
          %v803 = vld [vmem:[%s491 + $0x40] sm:$0xff]
          %v804 = vld [vmem:[%s491 + $0x48] sm:$0xff]
          %v805 = vld [vmem:[%s491 + $0x50] sm:$0xff]
          %v806 = vld [vmem:[%s491 + $0x58] sm:$0xff]
          %v807 = vld [vmem:[%s491 + $0x60] sm:$0xff]
          %v808 = vld [vmem:[%s491 + $0x68] sm:$0xff]
          %v809 = vld [vmem:[%s491 + $0x70] sm:$0xff]
          %v810 = vld [vmem:[%s491 + $0x78] sm:$0xff]
          %v811 = vstv %s760
          %v812 = vmul.f32 %v811, %v795
          %v813 = vmul.f32 %v811, %v796
          %v814 = vmul.f32 %v811, %v797
          %v815 = vmul.f32 %v811, %v798
          %v816 = vmul.f32 %v811, %v799
          %v817 = vmul.f32 %v811, %v800
          %v818 = vmul.f32 %v811, %v801
          %v819 = vmul.f32 %v811, %v802
          %v820 = vmul.f32 %v811, %v803
          %v821 = vmul.f32 %v811, %v804
          %v822 = vmul.f32 %v811, %v805
          %v823 = vmul.f32 %v811, %v806
          %v824 = vmul.f32 %v811, %v807
          %v825 = vmul.f32 %v811, %v808
          %v826 = vmul.f32 %v811, %v809
          %v827 = vmul.f32 %v811, %v810
          %v828 = vld [vmem:[%s482] sm:$0xff]
          %v829 = vld [vmem:[%s482 + $0x8] sm:$0xff]
          %v830 = vld [vmem:[%s482 + $0x10] sm:$0xff]
          %v831 = vld [vmem:[%s482 + $0x18] sm:$0xff]
          %v832 = vld [vmem:[%s482 + $0x20] sm:$0xff]
          %v833 = vld [vmem:[%s482 + $0x28] sm:$0xff]
          %v834 = vld [vmem:[%s482 + $0x30] sm:$0xff]
          %v835 = vld [vmem:[%s482 + $0x38] sm:$0xff]
          %v836 = vld [vmem:[%s482 + $0x40] sm:$0xff]
          %v837 = vld [vmem:[%s482 + $0x48] sm:$0xff]
          %v838 = vld [vmem:[%s482 + $0x50] sm:$0xff]
          %v839 = vld [vmem:[%s482 + $0x58] sm:$0xff]
          %v840 = vld [vmem:[%s482 + $0x60] sm:$0xff]
          %v841 = vld [vmem:[%s482 + $0x68] sm:$0xff]
          %v842 = vld [vmem:[%s482 + $0x70] sm:$0xff]
          %v843 = vld [vmem:[%s482 + $0x78] sm:$0xff]
          %845 = vset.pattern.permute.xlu0 0
          %846 = vperm.xlu0 %845, %v812
          %v847 = vpop.permute.xlu0 %846
          %850 = vset.pattern.permute.xlu0 0
          %851 = vperm.xlu0 %850, %v813
          %v852 = vpop.permute.xlu0 %851
          %855 = vset.pattern.permute.xlu0 0
          %856 = vperm.xlu0 %855, %v814
          %v857 = vpop.permute.xlu0 %856
          %860 = vset.pattern.permute.xlu0 0
          %861 = vperm.xlu0 %860, %v815
          %v862 = vpop.permute.xlu0 %861
          %865 = vset.pattern.permute.xlu0 0
          %866 = vperm.xlu0 %865, %v816
          %v867 = vpop.permute.xlu0 %866
          %870 = vset.pattern.permute.xlu0 0
          %871 = vperm.xlu0 %870, %v817
          %v872 = vpop.permute.xlu0 %871
          %875 = vset.pattern.permute.xlu0 0
          %876 = vperm.xlu0 %875, %v818
          %v877 = vpop.permute.xlu0 %876
          %880 = vset.pattern.permute.xlu0 0
          %881 = vperm.xlu0 %880, %v819
          %v882 = vpop.permute.xlu0 %881
          %885 = vset.pattern.permute.xlu0 0
          %886 = vperm.xlu0 %885, %v820
          %v887 = vpop.permute.xlu0 %886
          %890 = vset.pattern.permute.xlu0 0
          %891 = vperm.xlu0 %890, %v821
          %v892 = vpop.permute.xlu0 %891
          %895 = vset.pattern.permute.xlu0 0
          %896 = vperm.xlu0 %895, %v822
          %v897 = vpop.permute.xlu0 %896
          %900 = vset.pattern.permute.xlu0 0
          %901 = vperm.xlu0 %900, %v823
          %v902 = vpop.permute.xlu0 %901
          %905 = vset.pattern.permute.xlu0 0
          %906 = vperm.xlu0 %905, %v824
          %v907 = vpop.permute.xlu0 %906
          %910 = vset.pattern.permute.xlu0 0
          %911 = vperm.xlu0 %910, %v825
          %v912 = vpop.permute.xlu0 %911
          %915 = vset.pattern.permute.xlu0 0
          %916 = vperm.xlu0 %915, %v826
          %v917 = vpop.permute.xlu0 %916
          %920 = vset.pattern.permute.xlu0 0
          %921 = vperm.xlu0 %920, %v827
          %v922 = vpop.permute.xlu0 %921
          %v924 = vmul.f32 %v847, %v828
          %v925 = vmul.f32 %v852, %v829
          %v926 = vmul.f32 %v857, %v830
          %v927 = vmul.f32 %v862, %v831
          %v928 = vmul.f32 %v867, %v832
          %v929 = vmul.f32 %v872, %v833
          %v930 = vmul.f32 %v877, %v834
          %v931 = vmul.f32 %v882, %v835
          %v932 = vmul.f32 %v887, %v836
          %v933 = vmul.f32 %v892, %v837
          %v934 = vmul.f32 %v897, %v838
          %v935 = vmul.f32 %v902, %v839
          %v936 = vmul.f32 %v907, %v840
          %v937 = vmul.f32 %v912, %v841
          %v938 = vmul.f32 %v917, %v842
          %v939 = vmul.f32 %v922, %v843
          %v940 = vadd.f32 %v779, %v924
          %v941 = vadd.f32 %v780, %v925
          %v942 = vadd.f32 %v781, %v926
          %v943 = vadd.f32 %v782, %v927
          %v944 = vadd.f32 %v783, %v928
          %v945 = vadd.f32 %v784, %v929
          %v946 = vadd.f32 %v785, %v930
          %v947 = vadd.f32 %v786, %v931
          %v948 = vadd.f32 %v787, %v932
          %v949 = vadd.f32 %v788, %v933
          %v950 = vadd.f32 %v789, %v934
          %v951 = vadd.f32 %v790, %v935
          %v952 = vadd.f32 %v791, %v936
          %v953 = vadd.f32 %v792, %v937
          %v954 = vadd.f32 %v793, %v938
          %v955 = vadd.f32 %v794, %v939
          %v956 = vld [vmem:[%s437] sm:$0xff]
          %v957 = vld [vmem:[%s437 + $0x8] sm:$0xff]
          %v958 = vld [vmem:[%s437 + $0x10] sm:$0xff]
          %v959 = vld [vmem:[%s437 + $0x18] sm:$0xff]
          %v960 = vld [vmem:[%s437 + $0x20] sm:$0xff]
          %v961 = vld [vmem:[%s437 + $0x28] sm:$0xff]
          %v962 = vld [vmem:[%s437 + $0x30] sm:$0xff]
          %v963 = vld [vmem:[%s437 + $0x38] sm:$0xff]
          %v964 = vld [vmem:[%s437 + $0x40] sm:$0xff]
          %v965 = vld [vmem:[%s437 + $0x48] sm:$0xff]
          %v966 = vld [vmem:[%s437 + $0x50] sm:$0xff]
          %v967 = vld [vmem:[%s437 + $0x58] sm:$0xff]
          %v968 = vld [vmem:[%s437 + $0x60] sm:$0xff]
          %v969 = vld [vmem:[%s437 + $0x68] sm:$0xff]
          %v970 = vld [vmem:[%s437 + $0x70] sm:$0xff]
          %v971 = vld [vmem:[%s437 + $0x78] sm:$0xff]
          %v972 = vstv %s761
          %v973 = vmul.f32 %v972, %v956
          %v974 = vmul.f32 %v972, %v957
          %v975 = vmul.f32 %v972, %v958
          %v976 = vmul.f32 %v972, %v959
          %v977 = vmul.f32 %v972, %v960
          %v978 = vmul.f32 %v972, %v961
          %v979 = vmul.f32 %v972, %v962
          %v980 = vmul.f32 %v972, %v963
          %v981 = vmul.f32 %v972, %v964
          %v982 = vmul.f32 %v972, %v965
          %v983 = vmul.f32 %v972, %v966
          %v984 = vmul.f32 %v972, %v967
          %v985 = vmul.f32 %v972, %v968
          %v986 = vmul.f32 %v972, %v969
          %v987 = vmul.f32 %v972, %v970
          %v988 = vmul.f32 %v972, %v971
          %v989 = vadd.f32 %v940, %v973
          %v990 = vadd.f32 %v941, %v974
          %v991 = vadd.f32 %v942, %v975
          %v992 = vadd.f32 %v943, %v976
          %v993 = vadd.f32 %v944, %v977
          %v994 = vadd.f32 %v945, %v978
          %v995 = vadd.f32 %v946, %v979
          %v996 = vadd.f32 %v947, %v980
          %v997 = vadd.f32 %v948, %v981
          %v998 = vadd.f32 %v949, %v982
          %v999 = vadd.f32 %v950, %v983
          %v1000 = vadd.f32 %v951, %v984
          %v1001 = vadd.f32 %v952, %v985
          %v1002 = vadd.f32 %v953, %v986
          %v1003 = vadd.f32 %v954, %v987
          %v1004 = vadd.f32 %v955, %v988
          %1005 = vst [vmem:[%s482] sm:$0xff] %v989
          %1006 = vst [vmem:[%s482 + $0x8] sm:$0xff] %v990
          %1007 = vst [vmem:[%s482 + $0x10] sm:$0xff] %v991
          %1008 = vst [vmem:[%s482 + $0x18] sm:$0xff] %v992
          %1009 = vst [vmem:[%s482 + $0x20] sm:$0xff] %v993
          %1010 = vst [vmem:[%s482 + $0x28] sm:$0xff] %v994
          %1011 = vst [vmem:[%s482 + $0x30] sm:$0xff] %v995
          %1012 = vst [vmem:[%s482 + $0x38] sm:$0xff] %v996
          %1013 = vst [vmem:[%s482 + $0x40] sm:$0xff] %v997
          %1014 = vst [vmem:[%s482 + $0x48] sm:$0xff] %v998
          %1015 = vst [vmem:[%s482 + $0x50] sm:$0xff] %v999
          %1016 = vst [vmem:[%s482 + $0x58] sm:$0xff] %v1000
          %1017 = vst [vmem:[%s482 + $0x60] sm:$0xff] %v1001
          %1018 = vst [vmem:[%s482 + $0x68] sm:$0xff] %v1002
          %1019 = vst [vmem:[%s482 + $0x70] sm:$0xff] %v1003
          %1020 = vst [vmem:[%s482 + $0x78] sm:$0xff] %v1004
        $region101: #{tpu_custom_call.1} parent=76 // pred_fallthru
          _
        %s1021 = sand.u32 %s184, 1
        %s1022 = scalar_lea.sflag [#allocation7], %s1021
        %s1023 = sand.u32 %s184, 1
        %s1024 = smul.addr %s1023, 128
        %s1025 = scalar_lea.vmem [#allocation11], %s1024
        // Predicated region
        $region102: #{tpu_custom_call.1} parent=76 // pred_check
          %p1026 = pneg %p194
        $region103: #{tpu_custom_call.1} parent=76 // pred_check_branch
          %1028 = sbr.rel (%p1026) target = $region105
        $region104: #{tpu_custom_call.1} parent=76 // pred_region
          %s1029 = smul.u32 16, %s36
          %s1031 = ssub.s32 2048, 2048
          %1032 = vsyncadd %s1022, %s1031
          %s1033 = smul.addr %s1029, 128
          %s1034 = scalar_lea.hbm %s6, %s1033
          %s1035 = sshll.u32 %s1025, 4
          %s1036 = int_to_ptr.vmem [resolvable:$true] %s1035
          %1041 = dma.vmem_to_hbm [thread:$0]  %s1036, 2048, %s1034, %s1022, 128, 128, 8
        $region105: #{tpu_custom_call.1} parent=76 // pred_fallthru
          _
      $region77: #{tpu_custom_call.1} parent=5 // pred_fallthru
        _
      %p1042 = scmp.le.s32.totalorder 2, %s27
      // Predicated region
      $region106: #{tpu_custom_call.1} parent=5 // pred_check
        %p1043 = pneg %p1042
      $region107: #{tpu_custom_call.1} parent=5 // pred_check_branch
        %1045 = sbr.rel (%p1043) target = $region109
      $region108: #{tpu_custom_call.1} parent=5 // pred_region
        %s1046 = ssub.s32 %s27, 2
        // Predicated region
        $region110: #{tpu_custom_call.1} parent=108 // pred_check
          %p1047 = pneg %p200
        $region111: #{tpu_custom_call.1} parent=108 // pred_check_branch
          %1049 = sbr.rel (%p1047) target = $region113
        $region112: #{tpu_custom_call.1} parent=108 // pred_region
          %s1050 = sand.u32 %s185, 1
          %s1051 = scalar_lea.sflag [#allocation7], %s1050
          %s1052 = sand.u32 %s185, 1
          %s1053 = smul.addr %s1052, 128
          %s1054 = scalar_lea.vmem [#allocation11], %s1053
          %1055 = dma.done %s1051, 2048
        $region113: #{tpu_custom_call.1} parent=108 // pred_fallthru
          _
      $region109: #{tpu_custom_call.1} parent=5 // pred_fallthru
        _
    $region6: #{tpu_custom_call.1} parent=1 // loop_footer
      %s31 = sadd.s32 1, %s27
    $region7: #{tpu_custom_call.1} parent=1 // loop_footer_branch
      %26 = sbr.rel target = $region3
    $region8: #{tpu_custom_call.1} parent=1 // loop_exit
      _
    %1056 = vsyncpa [#allocation6], 1
    %s1057 = scalar_lea.sflag [#allocation6], 1
    %1058 = vsyncpa %s1057, 1
    %1059 = vsyncpa [#allocation9], 1
    %s1060 = scalar_lea.sflag [#allocation9], 1
    %1061 = vsyncpa %s1060, 1
    %1062 = vsyncpa [#allocation7], 1
    %s1063 = scalar_lea.sflag [#allocation7], 1
    %1064 = vsyncpa %s1063, 1

</llo_original>
